<compile_context>
chip_gen: v7x
topology: tpu7x:2x2x1
jax: 0.10.0
libtpu: 0.0.40
codegen_flags: <defaults>
</compile_context>

<pallas_src>
import functools
from collections import defaultdict

import numpy as np

import jax
import jax.numpy as jnp
from jax.experimental import pallas as pl
from jax.experimental.pallas import tpu as pltpu


def _conv_deriv_kernel(x_ref, o_ref, *, col_offsets, row_offsets, tap_plan,
                       Hout, Wout):
    """One grid step over a tile of images.

    x_ref: (B, H, W)       f32 VMEM block (channel dim squeezed by BlockSpec).
    o_ref: (B, Hout, Wout) f32 VMEM block.
    col_offsets / row_offsets: distinct lane / sublane offsets whose shifted
        copies are materialized exactly once and shared between taps.
    tap_plan: tuple of (weight, ((i, j, use_col), ...)) — nonzero stencil taps
        grouped by (pre-scaled) weight, so each group is summed first and
        multiplied once (no f32 FMA on the VPU -> fewer VALU ops).
    """
    img = x_ref[...]                                    # (B, H, W) f32

    # One lane-dim shift per shared column offset, one sublane shift per shared
    # row offset; every tap reuses one of these intermediates.
    cols = {j: img[:, :, j:j + Wout] for j in col_offsets}   # (B, H, Wout)
    rows = {i: img[:, i:i + Hout, :] for i in row_offsets}   # (B, Hout, W)

    def tap(i, j, use_col):
        if use_col:
            return cols[j][:, i:i + Hout, :]
        return rows[i][:, :, j:j + Wout]

    acc = None
    for w, members in tap_plan:
        term = None
        for (i, j, use_col) in members:
            t = tap(i, j, use_col)
            term = t if term is None else term + t
        term = term * w                                  # weight already has 1/resol
        acc = term if acc is None else acc + term

    if acc is None:                                      # degenerate all-zero stencil
        acc = jnp.zeros((img.shape[0], Hout, Wout), jnp.float32)

    o_ref[...] = acc.astype(o_ref.dtype)


def _two_tensorcore_device():
    """True on parts with 2 TensorCores per Pallas device (v7x-class)."""
    try:
        kind = jax.devices()[0].device_kind.lower()
    except Exception:
        return False
    return ("v7" in kind) or ("tpu7" in kind)


def conv2d_derivative(x, der_filter, resol, *, batch_tile=None):
    """Pallas equivalent of Conv2dDerivative.forward.

    x:          (N, 1, H, W) float32, NCHW layout.
    der_filter: fixed derivative stencil with trailing (K, K) dims
                (e.g. shape (1, 1, K, K) as in the PyTorch module).
                NOTE: must be a concrete (non-traced) constant; its values are
                baked into the kernel as compile-time weights.
    resol:      python float, grid resolution divisor.
    Returns:    (N, 1, H-K+1, W-K+1) float32 == valid conv / resol.
    """
    x = jnp.asarray(x, jnp.float32)
    N, C, H, W = x.shape
    assert C == 1, "Conv2dDerivative uses a single input/output channel"

    filt = np.asarray(der_filter, dtype=np.float64)
    assert filt.ndim >= 2, "derivative filter must have trailing (K, K) dims"
    Kh, Kw = int(filt.shape[-2]), int(filt.shape[-1])
    filt = filt.reshape(-1, Kh, Kw)[0]                   # (Kh, Kw) fixed stencil

    Hout, Wout = H - Kh + 1, W - Kw + 1
    assert Hout > 0 and Wout > 0, "input smaller than stencil"
    inv_resol = 1.0 / float(resol)

    # ---- static tap planning (all compile-time Python) --------------------
    taps = [(i, j, float(filt[i, j]) * inv_resol)
            for i in range(Kh) for j in range(Kw) if filt[i, j] != 0.0]
    n_taps = len(taps)

    # De-dup shifted copies: taps in a column with >=2 taps share one lane
    # shift; leftover single-tap columns whose row offset is shared by >=2 such
    # taps share one sublane shift instead (e.g. the Laplacian's center row).
    col_count = defaultdict(int)
    for i, j, _ in taps:
        col_count[j] += 1
    single = [(i, j) for i, j, _ in taps if col_count[j] == 1]
    row_count = defaultdict(int)
    for i, _ in single:
        row_count[i] += 1
    use_row = {(i, j) for (i, j) in single if row_count[i] >= 2}

    col_offsets = tuple(sorted({j for i, j, _ in taps if (i, j) not in use_row}))
    row_offsets = tuple(sorted({i for (i, j) in use_row}))

    # Factor shared weights: sum each equal-weight group once, multiply once.
    groups = defaultdict(list)
    for i, j, w in taps:
        groups[w].append((i, j, (i, j) not in use_row))
    tap_plan = tuple((w, tuple(members)) for w, members in groups.items())

    # ---- batch tiling ------------------------------------------------------
    two_tc = _two_tensorcore_device()
    # v7x has only 64 MiB physical VMEM per core -> stay at 32 MiB scoped;
    # v5e/v6e (128 MiB physical) can comfortably use more.
    vmem_limit = (32 if two_tc else 64) * 1024 * 1024

    if batch_tile is None:
        bytes_in = 4 * H * W
        bytes_out = 4 * Hout * Wout
        # double-buffered in/out blocks + in-kernel shifted copies / accumulator
        bytes_tmp = 4 * (len(col_offsets) * H * Wout
                         + len(row_offsets) * Hout * W
                         + 2 * Hout * Wout)
        per_img = 2 * (bytes_in + bytes_out) + bytes_tmp
        budget = int(0.6 * vmem_limit)                   # headroom for compiler
        bt = max(1, budget // max(per_img, 1))
        bt = max(1, min(bt, 512, N))
        if two_tc and N >= 2:
            # Keep >= 2 grid steps only where a second TensorCore can take them.
            bt = min(bt, (N + 1) // 2)
        batch_tile = max(1, bt)
    B = int(batch_tile)
    n_steps = pl.cdiv(N, B)

    kernel = functools.partial(
        _conv_deriv_kernel, col_offsets=col_offsets, row_offsets=row_offsets,
        tap_plan=tap_plan, Hout=Hout, Wout=Wout)

    cost = pl.CostEstimate(
        flops=int(2 * n_taps * N * Hout * Wout),
        transcendentals=0,
        bytes_accessed=int(4 * (N * H * W + N * Hout * Wout)),
    )

    out = pl.pallas_call(
        kernel,
        out_shape=jax.ShapeDtypeStruct((N, 1, Hout, Wout), jnp.float32),
        grid=(n_steps,),
        in_specs=[pl.BlockSpec((B, None, H, W), lambda n: (n, 0, 0, 0))],
        out_specs=pl.BlockSpec((B, None, Hout, Wout), lambda n: (n, 0, 0, 0)),
        compiler_params=pltpu.CompilerParams(
            dimension_semantics=("parallel",),
            vmem_limit_bytes=vmem_limit,
        ),
        cost_estimate=cost,
    )(x)
    return out


if __name__ == "__main__":
    # Same fixed 5x5 Laplacian stencil used by PhyCRNet_burgers.py
    lapl_op = [[[[0.0,       0.0,      -1.0 / 12, 0.0,      0.0],
                 [0.0,       0.0,       4.0 / 3,  0.0,      0.0],
                 [-1.0 / 12, 4.0 / 3,  -5.0,      4.0 / 3, -1.0 / 12],
                 [0.0,       0.0,       4.0 / 3,  0.0,      0.0],
                 [0.0,       0.0,      -1.0 / 12, 0.0,      0.0]]]]
    dx = 1.0 / 64.0
    resol = dx ** 2

    key = jax.random.PRNGKey(0)
    N, C, H, W = 2, 1, 16, 16
    x = jax.random.normal(key, (N, C, H, W), dtype=jnp.float32)

    out = jax.block_until_ready(conv2d_derivative(x, lapl_op, resol))

    K = 5
    Hout, Wout = H - K + 1, W - K + 1
    assert out.shape == (N, 1, Hout, Wout), out.shape

    # Pure-JAX f32 shift-and-add reference (no MXU conv) so the check does not
    # depend on TPU conv default (bf16) precision.
    filt = jnp.asarray(lapl_op, jnp.float32)[0, 0]
    ref = jnp.zeros((N, 1, Hout, Wout), jnp.float32)
    for i in range(K):
        for j in range(K):
            ref = ref + filt[i, j] * x[:, :, i:i + Hout, j:j + Wout]
    ref = ref / resol

    scale = max(float(jnp.max(jnp.abs(ref))), 1.0)
    max_err = float(jnp.max(jnp.abs(out - ref)))
    assert max_err <= 2e-5 * scale, f"mismatch: max_err={max_err}, scale={scale}"

    print("KERNEL_OK")
</pallas_src>

<mosaic_0001>
module attributes {stable_mosaic.version = 11 : i64} {
  func.func @_conv_deriv_kernel(%arg0: i32, %arg1: memref<2x1x16x16xf32, #tpu.memory_space<vmem>>, %arg2: memref<2x1x12x12xf32, #tpu.memory_space<vmem>>) attributes {dimension_semantics = [#tpu.dimension_semantics<parallel>], iteration_bounds = array<i64: 1>, scalar_prefetch = 0 : i64, scratch_operands = 0 : i64, tpu.core_type = #tpu.core_type<tc>, window_params = [{transform_indices = @transform_0, window_bounds = array<i64: 2, 1, 16, 16>}, {transform_indices = @transform_1, window_bounds = array<i64: 2, 1, 12, 12>}]} {
    %c0 = arith.constant 0 : index
    %c0_0 = arith.constant 0 : index
    %c0_1 = arith.constant 0 : index
    %c0_2 = arith.constant 0 : index
    %0 = vector.load %arg1[%c0, %c0_0, %c0_1, %c0_2] : memref<2x1x16x16xf32, #tpu.memory_space<vmem>>, vector<2x1x16x16xf32>
    %1 = vector.shape_cast %0 : vector<2x1x16x16xf32> to vector<2x16x16xf32>
    %2 = vector.extract_strided_slice %1 {offsets = [0, 0, 2], sizes = [2, 16, 12], strides = [1, 1, 1]} : vector<2x16x16xf32> to vector<2x16x12xf32>
    %3 = vector.extract_strided_slice %1 {offsets = [0, 2, 0], sizes = [2, 12, 16], strides = [1, 1, 1]} : vector<2x16x16xf32> to vector<2x12x16xf32>
    %4 = vector.extract_strided_slice %2 {offsets = [0, 0, 0], sizes = [2, 12, 12], strides = [1, 1, 1]} : vector<2x16x12xf32> to vector<2x12x12xf32>
    %5 = vector.extract_strided_slice %3 {offsets = [0, 0, 0], sizes = [2, 12, 12], strides = [1, 1, 1]} : vector<2x12x16xf32> to vector<2x12x12xf32>
    %6 = arith.addf %4, %5 : vector<2x12x12xf32>
    %7 = vector.extract_strided_slice %3 {offsets = [0, 0, 4], sizes = [2, 12, 12], strides = [1, 1, 1]} : vector<2x12x16xf32> to vector<2x12x12xf32>
    %8 = arith.addf %6, %7 : vector<2x12x12xf32>
    %9 = vector.extract_strided_slice %2 {offsets = [0, 4, 0], sizes = [2, 12, 12], strides = [1, 1, 1]} : vector<2x16x12xf32> to vector<2x12x12xf32>
    %10 = arith.addf %8, %9 : vector<2x12x12xf32>
    %cst = arith.constant -341.333344 : f32
    %11 = vector.broadcast %cst : f32 to vector<2x12x12xf32>
    %12 = arith.mulf %10, %11 : vector<2x12x12xf32>
    %13 = vector.extract_strided_slice %2 {offsets = [0, 1, 0], sizes = [2, 12, 12], strides = [1, 1, 1]} : vector<2x16x12xf32> to vector<2x12x12xf32>
    %14 = vector.extract_strided_slice %3 {offsets = [0, 0, 1], sizes = [2, 12, 12], strides = [1, 1, 1]} : vector<2x12x16xf32> to vector<2x12x12xf32>
    %15 = arith.addf %13, %14 : vector<2x12x12xf32>
    %16 = vector.extract_strided_slice %3 {offsets = [0, 0, 3], sizes = [2, 12, 12], strides = [1, 1, 1]} : vector<2x12x16xf32> to vector<2x12x12xf32>
    %17 = arith.addf %15, %16 : vector<2x12x12xf32>
    %18 = vector.extract_strided_slice %2 {offsets = [0, 3, 0], sizes = [2, 12, 12], strides = [1, 1, 1]} : vector<2x16x12xf32> to vector<2x12x12xf32>
    %19 = arith.addf %17, %18 : vector<2x12x12xf32>
    %cst_3 = arith.constant 5461.3335 : f32
    %20 = vector.broadcast %cst_3 : f32 to vector<2x12x12xf32>
    %21 = arith.mulf %19, %20 : vector<2x12x12xf32>
    %22 = arith.addf %12, %21 : vector<2x12x12xf32>
    %23 = vector.extract_strided_slice %2 {offsets = [0, 2, 0], sizes = [2, 12, 12], strides = [1, 1, 1]} : vector<2x16x12xf32> to vector<2x12x12xf32>
    %cst_4 = arith.constant -2.048000e+04 : f32
    %24 = vector.broadcast %cst_4 : f32 to vector<2x12x12xf32>
    %25 = arith.mulf %23, %24 : vector<2x12x12xf32>
    %26 = arith.addf %22, %25 : vector<2x12x12xf32>
    %c0_5 = arith.constant 0 : index
    %c0_6 = arith.constant 0 : index
    %c0_7 = arith.constant 0 : index
    %c0_8 = arith.constant 0 : index
    %27 = vector.load %arg2[%c0_5, %c0_6, %c0_7, %c0_8] : memref<2x1x12x12xf32, #tpu.memory_space<vmem>>, vector<2x1x12x12xf32>
    %28 = vector.shape_cast %27 : vector<2x1x12x12xf32> to vector<2x12x12xf32>
    %29 = vector.shape_cast %26 : vector<2x12x12xf32> to vector<2x1x12x12xf32>
    tpu.vector_store %arg2[%c0_5, %c0_6, %c0_7, %c0_8], %29 {strides = array<i32>} : memref<2x1x12x12xf32, #tpu.memory_space<vmem>>, vector<2x1x12x12xf32>,
    return
  }
  func.func @transform_0(%arg0: i32) -> (i32, i32, i32, i32) {
    %c0_i32 = arith.constant 0 : i32
    %c0_i32_0 = arith.constant 0 : i32
    %c0_i32_1 = arith.constant 0 : i32
    %c0_i32_2 = arith.constant 0 : i32
    return %arg0, %c0_i32, %c0_i32_0, %c0_i32_1 : i32, i32, i32, i32
  }
  func.func @transform_1(%arg0: i32) -> (i32, i32, i32, i32) {
    %c0_i32 = arith.constant 0 : i32
    %c0_i32_0 = arith.constant 0 : i32
    %c0_i32_1 = arith.constant 0 : i32
    %c0_i32_2 = arith.constant 0 : i32
    return %arg0, %c0_i32, %c0_i32_0, %c0_i32_1 : i32, i32, i32, i32
  }
}

</mosaic_0001>

<llo_original>
// kernel: tpu_custom_call.1
$region0: #{tpu_custom_call.1}
  #allocation0 [shape = 'u32[]', space=smem, size = 0x4, offset = 0x4, fixed_abs, tag = 'smem constant byte address 0x4 - core index']
  #allocation1 [shape = 'u32[144,128]{1,0:T(1,128)}', space=vmem, size = 0x12000, scoped, tag = 'internal scratch']
  %s0 = inlined_call_operand.hbm [shape: f32[2,1,16,16], index: 0, kind: input, shape index: {}]
  %s1 = inlined_call_operand.hbm [shape: f32[2,1,12,12], index: 1, kind: output, shape index: {}]
  %s2 = sld [smem:[#allocation0]]
  $region18: #{tpu_custom_call.1} parent=0
    _
  %s4 = ssub.s32 1, %s2
  %s5 = scalar_select 0, %s4, %s2
  $region1: #{tpu_custom_call.1} parent=0
    #allocation2 [shape = 'u8[16384]{0}', space=vmem, size = 0x4000, scoped, tag = 'input window, operand 0, single buffered']
    #allocation3 [shape = 's32[1]{0}', space=sflag, size = 0x4, scoped, tag = 'scoped memory for tpu_custom_call.1']
    #allocation4 [shape = 's32[1]{0}', space=sflag, size = 0x4, scoped, tag = 'scoped memory for tpu_custom_call.1']
    #allocation5 [shape = 'u8[16384]{0}', space=vmem, size = 0x4000, scoped, tag = 'output window, operand 0, single buffered']
    %6 = vsyncpa [#allocation3], 0
    %7 = vsyncpa [#allocation4], 0
    // Predicated region
    $region2: #{tpu_custom_call.1} parent=1 // pred_check
      _
    $region3: #{tpu_custom_call.1} parent=1 // pred_check_branch
      %9 = sbr.rel (0) target = $region5
    $region4: #{tpu_custom_call.1} parent=1 // pred_region
      %s11 = ssub.s32 512, 512
      %12 = vsyncadd [#allocation3], %s11
      %s13 = sshll.u32 [#allocation2], 4
      %s14 = int_to_ptr.vmem [resolvable:$true] %s13
      %19 = dma.hbm_to_vmem [thread:$0]  %s0, 512, %s14, [#allocation3], 128, 128, 8
    $region5: #{tpu_custom_call.1} parent=1 // pred_fallthru
      _
    // Predicated region
    $region6: #{tpu_custom_call.1} parent=1 // pred_check
      _
    $region7: #{tpu_custom_call.1} parent=1 // pred_check_branch
      %21 = sbr.rel (0) target = $region9
    $region8: #{tpu_custom_call.1} parent=1 // pred_region
      %22 = dma.done [#allocation3], 512
    $region9: #{tpu_custom_call.1} parent=1 // pred_fallthru
      _
    %v23 = vld [vmem:[#allocation2] sm:$0xff]
    %v24 = vld [vmem:[#allocation2 + $0x8] sm:$0xff]
    %v25 = vld [vmem:[#allocation2 + $0x10] sm:$0xff]
    %v26 = vld [vmem:[#allocation2 + $0x18] sm:$0xff]
    %vm31 = vcmask 1045504
    %v32 = vrot.slane %v23, 2
    %v33 = vrot.slane %v24, 2
    %v34 = vsel %vm31, %v32, %v33
    %v35 = vrot.slane %v25, 2
    %v36 = vrot.slane %v26, 2
    %v37 = vsel %vm31, %v35, %v36
    %38 = vrot.lane.b32.xlu0 %v34, 2
    %v39 = vpop.permute.xlu0 %38
    %40 = vrot.lane.b32.xlu0 %v33, 2
    %v41 = vpop.permute.xlu0 %40
    %42 = vrot.lane.b32.xlu0 %v37, 2
    %v43 = vpop.permute.xlu0 %42
    %44 = vrot.lane.b32.xlu0 %v36, 2
    %v45 = vpop.permute.xlu0 %44
    %v50 = vadd.f32 %v23, %v39
    %v51 = vadd.f32 %v24, %v41
    %v52 = vadd.f32 %v25, %v43
    %v53 = vadd.f32 %v26, %v45
    %54 = vrot.lane.b32.xlu0 %v34, 126
    %v55 = vpop.permute.xlu0 %54
    %56 = vrot.lane.b32.xlu0 %v33, 126
    %v57 = vpop.permute.xlu0 %56
    %58 = vrot.lane.b32.xlu0 %v37, 126
    %v59 = vpop.permute.xlu0 %58
    %60 = vrot.lane.b32.xlu0 %v36, 126
    %v61 = vpop.permute.xlu0 %60
    %v66 = vadd.f32 %v50, %v55
    %v67 = vadd.f32 %v51, %v57
    %v68 = vadd.f32 %v52, %v59
    %v69 = vadd.f32 %v53, %v61
    %vm70 = vcmask 1043456
    %v71 = vrot.slane %v23, 4
    %v72 = vrot.slane %v24, 4
    %v73 = vsel %vm70, %v71, %v72
    %v74 = vrot.slane %v25, 4
    %v75 = vrot.slane %v26, 4
    %v76 = vsel %vm70, %v74, %v75
    %v81 = vadd.f32 %v66, %v73
    %v82 = vadd.f32 %v67, %v72
    %v83 = vadd.f32 %v68, %v76
    %v84 = vadd.f32 %v69, %v75
    %v85 = vmul.f32 %v81, -341.33334
    %v86 = vmul.f32 %v82, -341.33334
    %v87 = vmul.f32 %v83, -341.33334
    %v88 = vmul.f32 %v84, -341.33334
    %vm89 = vcmask 1046528
    %v90 = vrot.slane %v23, 1
    %v91 = vrot.slane %v24, 1
    %v92 = vsel %vm89, %v90, %v91
    %v93 = vrot.slane %v25, 1
    %v94 = vrot.slane %v26, 1
    %v95 = vsel %vm89, %v93, %v94
    %96 = vrot.lane.b32.xlu0 %v92, 1
    %v97 = vpop.permute.xlu0 %96
    %98 = vrot.lane.b32.xlu0 %v91, 1
    %v99 = vpop.permute.xlu0 %98
    %100 = vrot.lane.b32.xlu0 %v95, 1
    %v101 = vpop.permute.xlu0 %100
    %102 = vrot.lane.b32.xlu0 %v94, 1
    %v103 = vpop.permute.xlu0 %102
    %v108 = vadd.f32 %v23, %v97
    %v109 = vadd.f32 %v24, %v99
    %v110 = vadd.f32 %v25, %v101
    %v111 = vadd.f32 %v26, %v103
    %112 = vrot.lane.b32.xlu0 %v92, 127
    %v113 = vpop.permute.xlu0 %112
    %114 = vrot.lane.b32.xlu0 %v91, 127
    %v115 = vpop.permute.xlu0 %114
    %116 = vrot.lane.b32.xlu0 %v95, 127
    %v117 = vpop.permute.xlu0 %116
    %118 = vrot.lane.b32.xlu0 %v94, 127
    %v119 = vpop.permute.xlu0 %118
    %v124 = vadd.f32 %v108, %v113
    %v125 = vadd.f32 %v109, %v115
    %v126 = vadd.f32 %v110, %v117
    %v127 = vadd.f32 %v111, %v119
    %v132 = vadd.f32 %v124, %v34
    %v133 = vadd.f32 %v125, %v33
    %v134 = vadd.f32 %v126, %v37
    %v135 = vadd.f32 %v127, %v36
    %v136 = vmul.f32 %v132, 5461.3335
    %v137 = vmul.f32 %v133, 5461.3335
    %v138 = vmul.f32 %v134, 5461.3335
    %v139 = vmul.f32 %v135, 5461.3335
    %v144 = vrot.slane %v136, 1
    %v145 = vrot.slane %v137, 1
    %v146 = vsel %vm89, %v144, %v145
    %v147 = vrot.slane %v138, 1
    %v148 = vrot.slane %v139, 1
    %v149 = vsel %vm89, %v147, %v148
    %v154 = vadd.f32 %v85, %v146
    %v155 = vadd.f32 %v86, %v145
    %v156 = vadd.f32 %v87, %v149
    %v157 = vadd.f32 %v88, %v148
    %v158 = vmul.f32 %v23, -20480.0
    %v159 = vmul.f32 %v24, -20480.0
    %v160 = vmul.f32 %v25, -20480.0
    %v161 = vmul.f32 %v26, -20480.0
    %v166 = vrot.slane %v158, 2
    %v167 = vrot.slane %v159, 2
    %v168 = vsel %vm31, %v166, %v167
    %v169 = vrot.slane %v160, 2
    %v170 = vrot.slane %v161, 2
    %v171 = vsel %vm31, %v169, %v170
    %v176 = vadd.f32 %v154, %v168
    %v177 = vadd.f32 %v155, %v167
    %v178 = vadd.f32 %v156, %v171
    %v179 = vadd.f32 %v157, %v170
    %184 = vrot.lane.b32.xlu0 %v176, 126
    %v185 = vpop.permute.xlu0 %184
    %186 = vrot.lane.b32.xlu0 %v177, 126
    %v187 = vpop.permute.xlu0 %186
    %188 = vrot.lane.b32.xlu0 %v178, 126
    %v189 = vpop.permute.xlu0 %188
    %190 = vrot.lane.b32.xlu0 %v179, 126
    %v191 = vpop.permute.xlu0 %190
    %vm196 = vcmask 97280
    %197 = vst.msk [vmem:[#allocation5] sm:$0xff] %vm196, %v185
    %vm198 = vcmask 93184
    %199 = vst.msk [vmem:[#allocation5 + $0x8] sm:$0xf] %vm198, %v187
    %200 = vst.msk [vmem:[#allocation5 + $0x10] sm:$0xff] %vm196, %v189
    %201 = vst.msk [vmem:[#allocation5 + $0x18] sm:$0xf] %vm198, %v191
    // Predicated region
    $region10: #{tpu_custom_call.1} parent=1 // pred_check
      _
    $region11: #{tpu_custom_call.1} parent=1 // pred_check_branch
      %203 = sbr.rel (0) target = $region13
    $region12: #{tpu_custom_call.1} parent=1 // pred_region
      %s205 = ssub.s32 512, 512
      %206 = vsyncadd [#allocation4], %s205
      %s207 = sshll.u32 [#allocation5], 4
      %s208 = int_to_ptr.vmem [resolvable:$true] %s207
      %213 = dma.vmem_to_hbm [thread:$0]  %s208, 512, %s1, [#allocation4], 128, 128, 8
    $region13: #{tpu_custom_call.1} parent=1 // pred_fallthru
      _
    // Predicated region
    $region14: #{tpu_custom_call.1} parent=1 // pred_check
      _
    $region15: #{tpu_custom_call.1} parent=1 // pred_check_branch
      %215 = sbr.rel (0) target = $region17
    $region16: #{tpu_custom_call.1} parent=1 // pred_region
      %216 = dma.done [#allocation4], 512
    $region17: #{tpu_custom_call.1} parent=1 // pred_fallthru
      _
    %217 = vsyncpa [#allocation3], 1
    %218 = vsyncpa [#allocation4], 1

</llo_original>
